<compile_context>
chip_gen: v6e
topology: v6e:2x2x1
jax: 0.10.0
libtpu: 0.0.40
codegen_flags: <defaults>
</compile_context>

<pallas_src>
import jax
import jax.numpy as jnp
from jax.experimental import pallas as pl
from jax.experimental.pallas import tpu as pltpu


def _unit_linear_kernel(flag_ref, x_ref, w_ref, b_ref, o_ref):
    # flag_ref: (1,) int32 in SMEM
    # x_ref:    (B, IN)        VMEM
    # w_ref:    (2, IN, OUT)   VMEM  (both models, pre-transposed to (in, out))
    # b_ref:    (2, 1, OUT)    VMEM
    # o_ref:    (B, OUT)       VMEM
    idx = jnp.where(flag_ref[0] == 1, 0, 1)      # model_1 -> slot 0, else slot 1
    w = w_ref[idx]                                # dynamic load on leading axis
    b = b_ref[idx]                                # (1, OUT)
    acc = jnp.dot(x_ref[...], w, preferred_element_type=jnp.float32)
    o_ref[...] = (acc + b).astype(o_ref.dtype)


@jax.jit
def _unit_forward(flag_arr, x, w_stacked, b_stacked):
    B = x.shape[0]
    OUT = w_stacked.shape[2]
    return pl.pallas_call(
        _unit_linear_kernel,
        out_shape=jax.ShapeDtypeStruct((B, OUT), x.dtype),
        in_specs=[
            pl.BlockSpec(memory_space=pltpu.MemorySpace.SMEM),   # flag scalar
            pl.BlockSpec(memory_space=pltpu.MemorySpace.VMEM),   # x
            pl.BlockSpec(memory_space=pltpu.MemorySpace.VMEM),   # stacked weights
            pl.BlockSpec(memory_space=pltpu.MemorySpace.VMEM),   # stacked biases
        ],
        out_specs=pl.BlockSpec(memory_space=pltpu.MemorySpace.VMEM),
    )(flag_arr, x, w_stacked, b_stacked)


class UnitModel:
    """JAX/Pallas port of the PyTorch UnitModel wrapper.

    model_1 / model_2 are dicts with PyTorch-convention linear params:
      {"weight": (out, in), "bias": (out,)}
    Both are stacked (and the weights transposed) once here, so the per-call
    path contains only the single Pallas kernel launch.
    """

    def __init__(self, model_1, model_2):
        self.w_stacked = jnp.stack(
            [model_1["weight"].T, model_2["weight"].T])            # (2, in, out)
        self.b_stacked = jnp.stack(
            [model_1["bias"][None, :], model_2["bias"][None, :]])  # (2, 1, out)

    def forward(self, x, flag):
        # flag may be a Python int or a device scalar; either way it is passed
        # as an int32 device value -> one executable serves both branches.
        flag_arr = jnp.asarray(flag, dtype=jnp.int32).reshape((1,))
        return _unit_forward(flag_arr, x, self.w_stacked, self.b_stacked)

    __call__ = forward


def _make_linear_params(key, in_features, out_features, dtype=jnp.float32):
    kw, kb = jax.random.split(key)
    bound = 1.0 / (in_features ** 0.5)
    weight = jax.random.uniform(
        kw, (out_features, in_features), dtype, minval=-bound, maxval=bound)
    bias = jax.random.uniform(
        kb, (out_features,), dtype, minval=-bound, maxval=bound)
    return {"weight": weight, "bias": bias}


if __name__ == "__main__":
    # TODO(synk): the original script's model_1/model_2 definitions are not in
    # the module; they are synthesized here as hidden->hidden linear layers.
    batch, hidden = 8, 128   # 128-lane-aligned output, 8-sublane-aligned batch

    key = jax.random.PRNGKey(0)
    k1, k2, kx = jax.random.split(key, 3)

    model_1 = _make_linear_params(k1, hidden, hidden)
    model_2 = _make_linear_params(k2, hidden, hidden)
    unit = UnitModel(model_1, model_2)

    x = jax.random.normal(kx, (batch, hidden), jnp.float32)

    # Exercise both branches of the flag dispatch (same compiled executable).
    y1 = unit(x, flag=1)
    y2 = unit(x, flag=0)
    jax.block_until_ready(y1)
    jax.block_until_ready(y2)

    # Cross-check against plain-JAX reference.
    ref1 = x @ model_1["weight"].T + model_1["bias"]
    ref2 = x @ model_2["weight"].T + model_2["bias"]
    assert jnp.allclose(y1, ref1, atol=1e-5), "branch 1 mismatch"
    assert jnp.allclose(y2, ref2, atol=1e-5), "branch 2 mismatch"
    assert not jnp.allclose(y1, y2), "flag dispatch not differentiating models"

    print("KERNEL_OK")
</pallas_src>

<mosaic_0001>
module attributes {stable_mosaic.version = 11 : i64} {
  func.func @_unit_linear_kernel(%arg0: memref<1xi32, #tpu.memory_space<smem>>, %arg1: memref<8x128xf32, #tpu.memory_space<vmem>>, %arg2: memref<2x128x128xf32, #tpu.memory_space<vmem>>, %arg3: memref<2x1x128xf32, #tpu.memory_space<vmem>>, %arg4: memref<8x128xf32, #tpu.memory_space<vmem>>) attributes {dimension_semantics = [], scalar_prefetch = 0 : i64, scratch_operands = 0 : i64, tpu.core_type = #tpu.core_type<tc>} {
    %c0 = arith.constant 0 : index
    %0 = memref.load %arg0[%c0] : memref<1xi32, #tpu.memory_space<smem>>
    %c1_i32 = arith.constant 1 : i32
    %1 = arith.cmpi eq, %0, %c1_i32 : i32
    %c0_i32 = arith.constant 0 : i32
    %c1_i32_0 = arith.constant 1 : i32
    %2 = arith.select %1, %c0_i32, %c1_i32_0 : i32
    %3 = arith.index_cast %2 : i32 to index
    %c0_1 = arith.constant 0 : index
    %c0_2 = arith.constant 0 : index
    %4 = vector.load %arg2[%3, %c0_1, %c0_2] : memref<2x128x128xf32, #tpu.memory_space<vmem>>, vector<1x128x128xf32>
    %5 = vector.shape_cast %4 : vector<1x128x128xf32> to vector<128x128xf32>
    %6 = arith.index_cast %2 : i32 to index
    %c0_3 = arith.constant 0 : index
    %c0_4 = arith.constant 0 : index
    %7 = vector.load %arg3[%6, %c0_3, %c0_4] : memref<2x1x128xf32, #tpu.memory_space<vmem>>, vector<1x1x128xf32>
    %8 = vector.shape_cast %7 : vector<1x1x128xf32> to vector<1x128xf32>
    %c0_5 = arith.constant 0 : index
    %c0_6 = arith.constant 0 : index
    %9 = vector.load %arg1[%c0_5, %c0_6] : memref<8x128xf32, #tpu.memory_space<vmem>>, vector<8x128xf32>
    %cst = arith.constant dense<0.000000e+00> : vector<8x128xf32>
    %10 = tpu.matmul %9, %5, %cst {dimension_numbers = #tpu.dot_dimension_numbers<[1], [0], [0], [1], [0, 0, 1, 1], [], []>} : vector<8x128xf32>, vector<128x128xf32>, vector<8x128xf32> -> vector<8x128xf32>
    %11 = vector.broadcast %8 : vector<1x128xf32> to vector<8x128xf32>
    %12 = arith.addf %10, %11 : vector<8x128xf32>
    %c0_7 = arith.constant 0 : index
    %c0_8 = arith.constant 0 : index
    %13 = vector.load %arg4[%c0_7, %c0_8] : memref<8x128xf32, #tpu.memory_space<vmem>>, vector<8x128xf32>
    tpu.vector_store %arg4[%c0_7, %c0_8], %12 {strides = array<i32>} : memref<8x128xf32, #tpu.memory_space<vmem>>, vector<8x128xf32>,
    return
  }
}

</mosaic_0001>

<llo_original>
// kernel: _unit_forward.1
$region0: #{_unit_forward.1}
  #allocation0 [shape = 'u32[]', space=smem, size = 0x4, offset = 0x4, fixed_abs, tag = 'smem constant byte address 0x4 - core index']
  #allocation1 [shape = 'u32[144,128]{1,0:T(1,128)}', space=vmem, size = 0x12000, scoped, tag = 'internal scratch']
  #allocation2 [shape = 's32[1]{0:T(128)S(6)}', space=smem, size = 0x200, scoped, tag = 'scoped memory for _unit_forward.1']
  %s0 = inlined_call_operand.<no memory space> [shape: s32[1], index: 0, kind: input, shape index: {}]
  %s1 = inlined_call_operand.hbm [shape: f32[8,128], index: 1, kind: input, shape index: {}]
  %s2 = inlined_call_operand.hbm [shape: f32[2,128,128], index: 2, kind: input, shape index: {}]
  %s3 = inlined_call_operand.vmem [shape: f32[2,1,128], index: 3, kind: input, shape index: {}]
  %s4 = inlined_call_operand.hbm [shape: f32[8,128], index: 4, kind: output, shape index: {}]
  %s5 = sld [smem:[#allocation0]]
  $region34: #{_unit_forward.1} parent=0
    _
  %s7 = ssub.s32 1, %s5
  %s8 = scalar_select 0, %s7, %s5
  %9 = sst [smem:[#allocation2]] %s0
  $region1: #{_unit_forward.1} parent=0
    #allocation3 [shape = 'u8[4096]{0}', space=vmem, size = 0x1000, scoped, tag = 'input window, operand 1, single buffered']
    #allocation4 [shape = 's32[1]{0}', space=sflag, size = 0x4, scoped, tag = 'scoped memory for _unit_forward.1']
    #allocation5 [shape = 's32[1]{0}', space=sflag, size = 0x4, scoped, tag = 'scoped memory for _unit_forward.1']
    #allocation6 [shape = 'u8[131072]{0}', space=vmem, size = 0x20000, scoped, tag = 'input window, operand 2, single buffered']
    #allocation7 [shape = 's32[1]{0}', space=sflag, size = 0x4, scoped, tag = 'scoped memory for _unit_forward.1']
    #allocation8 [shape = 'u8[4096]{0}', space=vmem, size = 0x1000, scoped, tag = 'output window, operand 0, single buffered']
    %10 = vsyncpa [#allocation4], 0
    %11 = vsyncpa [#allocation7], 0
    %12 = vsyncpa [#allocation5], 0
    // Predicated region
    $region2: #{_unit_forward.1} parent=1 // pred_check
      _
    $region3: #{_unit_forward.1} parent=1 // pred_check_branch
      %14 = sbr.rel (0) target = $region5
    $region4: #{_unit_forward.1} parent=1 // pred_region
      _
    $region5: #{_unit_forward.1} parent=1 // pred_fallthru
      _
    // Predicated region
    $region6: #{_unit_forward.1} parent=1 // pred_check
      _
    $region7: #{_unit_forward.1} parent=1 // pred_check_branch
      %16 = sbr.rel (0) target = $region9
    $region8: #{_unit_forward.1} parent=1 // pred_region
      %s18 = ssub.s32 128, 128
      %19 = vsyncadd [#allocation4], %s18
      %s21 = sshll.u32 [#allocation3], 4
      %s22 = int_to_ptr.vmem [resolvable:$true] %s21
      %24 = dma.hbm_to_vmem [thread:$0]  %s1, 128, %s22, [#allocation4]
    $region9: #{_unit_forward.1} parent=1 // pred_fallthru
      _
    // Predicated region
    $region10: #{_unit_forward.1} parent=1 // pred_check
      _
    $region11: #{_unit_forward.1} parent=1 // pred_check_branch
      %26 = sbr.rel (0) target = $region13
    $region12: #{_unit_forward.1} parent=1 // pred_region
      %s28 = ssub.s32 4096, 4096
      %29 = vsyncadd [#allocation7], %s28
      %s30 = sshll.u32 [#allocation6], 4
      %s31 = int_to_ptr.vmem [resolvable:$true] %s30
      %36 = dma.hbm_to_vmem [thread:$0]  %s2, 4096, %s31, [#allocation7], 128, 128, 8
    $region13: #{_unit_forward.1} parent=1 // pred_fallthru
      _
    // Predicated region
    $region14: #{_unit_forward.1} parent=1 // pred_check
      _
    $region15: #{_unit_forward.1} parent=1 // pred_check_branch
      %38 = sbr.rel (0) target = $region17
    $region16: #{_unit_forward.1} parent=1 // pred_region
      _
    $region17: #{_unit_forward.1} parent=1 // pred_fallthru
      _
    // Predicated region
    $region18: #{_unit_forward.1} parent=1 // pred_check
      _
    $region19: #{_unit_forward.1} parent=1 // pred_check_branch
      %40 = sbr.rel (0) target = $region21
    $region20: #{_unit_forward.1} parent=1 // pred_region
      %41 = dma.done [#allocation4], 128
    $region21: #{_unit_forward.1} parent=1 // pred_fallthru
      _
    // Predicated region
    $region22: #{_unit_forward.1} parent=1 // pred_check
      _
    $region23: #{_unit_forward.1} parent=1 // pred_check_branch
      %43 = sbr.rel (0) target = $region25
    $region24: #{_unit_forward.1} parent=1 // pred_region
      %44 = dma.done [#allocation7], 4096
    $region25: #{_unit_forward.1} parent=1 // pred_fallthru
      _
    %s45 = sld [smem:[#allocation2]]
    %p46 = scmp.ne.s32.totalorder %s45, 1
    %s47 = scalar_select %p46, 1, 0
    %s48 = smul.u32 %s47, 128
    %s49 = scalar_lea.vmem [#allocation6], %s48
    %v50 = vld [vmem:[%s49] sm:$0xff]
    %v51 = vld [vmem:[%s49 + $0x8] sm:$0xff]
    %v52 = vld [vmem:[%s49 + $0x10] sm:$0xff]
    %v53 = vld [vmem:[%s49 + $0x18] sm:$0xff]
    %v54 = vld [vmem:[%s49 + $0x20] sm:$0xff]
    %v55 = vld [vmem:[%s49 + $0x28] sm:$0xff]
    %v56 = vld [vmem:[%s49 + $0x30] sm:$0xff]
    %v57 = vld [vmem:[%s49 + $0x38] sm:$0xff]
    %v58 = vld [vmem:[%s49 + $0x40] sm:$0xff]
    %v59 = vld [vmem:[%s49 + $0x48] sm:$0xff]
    %v60 = vld [vmem:[%s49 + $0x50] sm:$0xff]
    %v61 = vld [vmem:[%s49 + $0x58] sm:$0xff]
    %v62 = vld [vmem:[%s49 + $0x60] sm:$0xff]
    %v63 = vld [vmem:[%s49 + $0x68] sm:$0xff]
    %v64 = vld [vmem:[%s49 + $0x70] sm:$0xff]
    %v65 = vld [vmem:[%s49 + $0x78] sm:$0xff]
    %s66 = scalar_lea.vmem %s3, %s47
    %v67 = vld [vmem:[%s66] sm:$0x1]
    %v68 = vld [vmem:[#allocation3] sm:$0xff]
    %v70 = vlaneseq
    %v71 = vshrl.u32 %v70, 7
    %v72 = vsub.s32 0, %v71
    %v73 = vrot.slane %v67, %v72
    %75 = vmatprep.subr.mxu0 0.0
    %76 = vmatpush1.msra.mxu0 %v65
    %77 = vmatprep.subr.mxu0 0.0
    %78 = vmatpush1.msra.mxu0 %v64
    %79 = vmatprep.subr.mxu0 0.0
    %80 = vmatpush1.msra.mxu0 %v63
    %81 = vmatprep.subr.mxu0 0.0
    %82 = vmatpush1.msra.mxu0 %v62
    %83 = vmatprep.subr.mxu0 0.0
    %84 = vmatpush1.msra.mxu0 %v61
    %85 = vmatprep.subr.mxu0 0.0
    %86 = vmatpush1.msra.mxu0 %v60
    %87 = vmatprep.subr.mxu0 0.0
    %88 = vmatpush1.msra.mxu0 %v59
    %89 = vmatprep.subr.mxu0 0.0
    %90 = vmatpush1.msra.mxu0 %v58
    %91 = vmatprep.subr.mxu0 0.0
    %92 = vmatpush1.msra.mxu0 %v57
    %93 = vmatprep.subr.mxu0 0.0
    %94 = vmatpush1.msra.mxu0 %v56
    %95 = vmatprep.subr.mxu0 0.0
    %96 = vmatpush1.msra.mxu0 %v55
    %97 = vmatprep.subr.mxu0 0.0
    %98 = vmatpush1.msra.mxu0 %v54
    %99 = vmatprep.subr.mxu0 0.0
    %100 = vmatpush1.msra.mxu0 %v53
    %101 = vmatprep.subr.mxu0 0.0
    %102 = vmatpush1.msra.mxu0 %v52
    %103 = vmatprep.subr.mxu0 0.0
    %104 = vmatpush1.msra.mxu0 %v51
    %105 = vmatprep.subr.mxu0 0.0
    %106 = vmatpush1.msra.mxu0 %v50
    %107 = vmatprep.subr.mxu0 0.0
    %108 = vmatpush2.msra.mxu0 0.0
    %109 = vmatprep.subr.mxu0 0.0
    %110 = vmatpush2.msra.mxu0 0.0
    %111 = vmatprep.subr.mxu0 0.0
    %112 = vmatpush2.msra.mxu0 0.0
    %113 = vmatprep.subr.mxu0 0.0
    %114 = vmatpush2.msra.mxu0 0.0
    %115 = vmatprep.subr.mxu0 0.0
    %116 = vmatpush2.msra.mxu0 0.0
    %117 = vmatprep.subr.mxu0 0.0
    %118 = vmatpush2.msra.mxu0 0.0
    %119 = vmatprep.subr.mxu0 0.0
    %120 = vmatpush2.msra.mxu0 0.0
    %121 = vmatprep.subr.mxu0 0.0
    %122 = vmatpush2.msra.mxu0 0.0
    %123 = vmatprep.subr.mxu0 0.0
    %124 = vmatpush2.msra.mxu0 0.0
    %125 = vmatprep.subr.mxu0 0.0
    %126 = vmatpush2.msra.mxu0 0.0
    %127 = vmatprep.subr.mxu0 0.0
    %128 = vmatpush2.msra.mxu0 0.0
    %129 = vmatprep.subr.mxu0 0.0
    %130 = vmatpush2.msra.mxu0 0.0
    %131 = vmatprep.subr.mxu0 0.0
    %132 = vmatpush2.msra.mxu0 0.0
    %133 = vmatprep.subr.mxu0 0.0
    %134 = vmatpush2.msra.mxu0 0.0
    %135 = vmatprep.subr.mxu0 0.0
    %136 = vmatpush2.msra.mxu0 0.0
    %137 = vmatprep.subr.mxu0 0.0
    %138 = vmatpush2.msra.mxu0 0.0
    %139 = vmatprep.mubr.f32.mxu0 0.0
    %140 = vmatmul.mubr.f32.gmra.mxu0 %v68
    %v141 = vpop.f32.mrf.mxu0
    %v142 = vadd.f32 %v73, %v141
    %v143 = vpop.f32.mrf.mxu0
    %144 = vdwg.mxu0
    %145 = vst [vmem:[#allocation8] sm:$0xff] %v142
    // Predicated region
    $region26: #{_unit_forward.1} parent=1 // pred_check
      _
    $region27: #{_unit_forward.1} parent=1 // pred_check_branch
      %147 = sbr.rel (0) target = $region29
    $region28: #{_unit_forward.1} parent=1 // pred_region
      %s149 = ssub.s32 128, 128
      %150 = vsyncadd [#allocation5], %s149
      %s152 = sshll.u32 [#allocation8], 4
      %s153 = int_to_ptr.vmem [resolvable:$true] %s152
      %155 = dma.vmem_to_hbm [thread:$0]  %s153, 128, %s4, [#allocation5]
    $region29: #{_unit_forward.1} parent=1 // pred_fallthru
      _
    // Predicated region
    $region30: #{_unit_forward.1} parent=1 // pred_check
      _
    $region31: #{_unit_forward.1} parent=1 // pred_check_branch
      %157 = sbr.rel (0) target = $region33
    $region32: #{_unit_forward.1} parent=1 // pred_region
      %158 = dma.done [#allocation5], 128
    $region33: #{_unit_forward.1} parent=1 // pred_fallthru
      _
    %159 = vsyncpa [#allocation4], 1
    %160 = vsyncpa [#allocation7], 1
    %161 = vsyncpa [#allocation5], 1

</llo_original>
